<compile_context>
chip_gen: v7x
topology: tpu7x:2x2x1
jax: 0.10.0
libtpu: 0.0.40
codegen_flags: <defaults>
</compile_context>

<pallas_src>
import functools

import jax
import jax.numpy as jnp
import numpy as np
from jax.experimental import pallas as pl
from jax.experimental.pallas import tpu as pltpu


# ----------------------------------------------------------------------------
# Small helpers
# ----------------------------------------------------------------------------
def _round_up(x, m):
    return ((x + m - 1) // m) * m


def _pick_tile(m, cap=1024):
    """Largest tile <= cap that divides m (falls back to full m)."""
    for t in (2048, 1024, 512, 256, 128, 64, 32, 16, 8):
        if t <= cap and t <= m and m % t == 0:
            return t
    return m


def _vmem_capacity_bytes():
    try:
        return int(pltpu.get_tpu_info().vmem_capacity_bytes)
    except Exception:
        return 64 << 20      # conservative (v7x-sized) fallback


def _pick_block_h(h, w, target_kv, max_kv):
    """Rows-per-KV-tile: bh | h, bh % 8 == 0, (bh*w) % 128 == 0, bh*w <= max_kv."""
    cands = [bh for bh in range(8, h + 1, 8)
             if h % bh == 0 and (bh * w) % 128 == 0]
    if not cands:
        # TODO(synk): pad N to a tileable size instead of one monolithic KV tile.
        return h
    fitting = [bh for bh in cands if bh * w <= max_kv]
    pool = fitting if fitting else [min(cands)]
    return min(pool, key=lambda bh: abs(bh * w - target_kv))


def _lane_cast(stat, width):
    """Adapt a lane-128 running statistic to broadcast against width `width`."""
    if width == stat.shape[-1]:
        return stat
    return stat[:, :1]


# ----------------------------------------------------------------------------
# Fused cpb MLPs (both branches, all batches) — transposed so stores are
# lane-dense:   out = w2 @ relu(w1 @ x_t + b1)   with x_t = (2, M_tile)
# ----------------------------------------------------------------------------
def _cpb_kernel(x_ref, w1_ref, b1_ref, w2_ref, o_ref):
    hid = jnp.dot(w1_ref[0], x_ref[0, 0],
                  preferred_element_type=jnp.float32) + b1_ref[0]
    hid = jnp.maximum(hid, 0.0)
    o_ref[0, 0] = jnp.dot(w2_ref[0], hid,
                          preferred_element_type=jnp.float32).astype(o_ref.dtype)


def cpb_mlp_fused(x_stack, w1_stack, b1_stack, w2_stack):
    S, B, _, Mpad = x_stack.shape
    hidden = w1_stack.shape[1]
    nH = w2_stack.shape[1]
    tm = _pick_tile(Mpad, cap=512)
    return pl.pallas_call(
        _cpb_kernel,
        out_shape=jax.ShapeDtypeStruct((S, B, nH, Mpad), x_stack.dtype),
        grid_spec=pltpu.PrefetchScalarGridSpec(
            num_scalar_prefetch=0,
            grid=(S, B, Mpad // tm),
            in_specs=[pl.BlockSpec((1, 1, 2, tm), lambda s, b, i: (s, b, 0, i)),
                      pl.BlockSpec((1, hidden, 2), lambda s, b, i: (s, 0, 0)),
                      pl.BlockSpec((1, hidden, 1), lambda s, b, i: (s, 0, 0)),
                      pl.BlockSpec((1, nH, hidden), lambda s, b, i: (s, 0, 0))],
            out_specs=pl.BlockSpec((1, 1, nH, tm), lambda s, b, i: (s, b, 0, i))),
        compiler_params=pltpu.CompilerParams(
            dimension_semantics=("parallel", "parallel", "parallel")),
    )(x_stack, w1_stack, b1_stack, w2_stack)


# ----------------------------------------------------------------------------
# Fused k & v projections — two inputs, two outputs, one pallas_call,
# no stack copy through HBM.
# ----------------------------------------------------------------------------
def _kv_proj_kernel(kx_ref, vx_ref, wk_ref, bk_ref, wv_ref, bv_ref,
                    ko_ref, vo_ref):
    ko_ref[...] = (jnp.dot(kx_ref[...], wk_ref[...],
                           preferred_element_type=jnp.float32)
                   + bk_ref[...]).astype(ko_ref.dtype)
    vo_ref[...] = (jnp.dot(vx_ref[...], wv_ref[...],
                           preferred_element_type=jnp.float32)
                   + bv_ref[...]).astype(vo_ref.dtype)


def kv_project(kx, vx, wk_t, bk, wv_t, bv):
    M, K = kx.shape
    out = wk_t.shape[1]
    tm = _pick_tile(M, cap=1024)
    xspec = pl.BlockSpec((tm, K), lambda i: (i, 0))
    wspec = pl.BlockSpec((K, out), lambda i: (0, 0))
    bspec = pl.BlockSpec((1, out), lambda i: (0, 0))
    ospec = pl.BlockSpec((tm, out), lambda i: (i, 0))
    return pl.pallas_call(
        _kv_proj_kernel,
        out_shape=(jax.ShapeDtypeStruct((M, out), kx.dtype),
                   jax.ShapeDtypeStruct((M, out), vx.dtype)),
        grid_spec=pltpu.PrefetchScalarGridSpec(
            num_scalar_prefetch=0,
            grid=(M // tm,),
            in_specs=[xspec, xspec, wspec, bspec, wspec, bspec],
            out_specs=[ospec, ospec]),
        compiler_params=pltpu.CompilerParams(
            dimension_semantics=("parallel",)),
    )(kx, vx, wk_t, bk.reshape(1, out), wv_t, bv.reshape(1, out))


# ----------------------------------------------------------------------------
# Fused attention core: per-batch lane-dense output, KV-tiled online softmax,
# all heads handled by block-diagonal q / masked accumulator (no head loop).
# q projection fused at kv==0, output projection fused at finalize.
# ----------------------------------------------------------------------------
def _attn_kernel(q_in_ref, k_ref, v_ref, rpex_ref, rpey_ref, mask_ref,
                 ey_ref, ex_ref, hm_ref, sel_ref, qw_ref, qb_ref,
                 pw_ref, pb_ref, o_ref,
                 qblk_ref, bx_ref, m_ref, l_ref, acc_ref, *, num_heads):
    f32 = jnp.float32
    kv = pl.program_id(1)
    dim = k_ref.shape[2]

    @pl.when(kv == 0)
    def _init():
        # fused (pre-scaled) q projection + block-diagonal head expansion
        q_p = jnp.dot(q_in_ref[0], qw_ref[...],
                      preferred_element_type=f32) + qb_ref[...]        # (Nq, dim)
        q_rep = jax.lax.dot_general(sel_ref[...], q_p,                 # (R, dim)
                                    (((0,), (0,)), ((), ())),
                                    preferred_element_type=f32)
        qblk_ref[...] = q_rep * hm_ref[...]
        # KV-step-invariant x-direction bias, expanded once per batch
        bx_ref[...] = jnp.dot(rpex_ref[0], ex_ref[...],
                              preferred_element_type=f32)              # (R, kvb)
        m_ref[...] = jnp.full_like(m_ref, -jnp.inf)
        l_ref[...] = jnp.zeros_like(l_ref)
        acc_ref[...] = jnp.zeros_like(acc_ref)

    k_tile = k_ref[0]                                   # (kvb, dim)
    v_tile = v_ref[0]                                   # (kvb, dim)

    # scores for ALL heads in one MXU matmul (block-diagonal q expansion)
    s = jax.lax.dot_general(qblk_ref[...], k_tile, (((1,), (1,)), ((), ())),
                            preferred_element_type=f32)                # (R, kvb)
    # y-direction bias for this row block, all heads in one matmul
    s += jax.lax.dot_general(rpey_ref[0], ey_ref[...],
                             (((0,), (0,)), ((), ())),
                             preferred_element_type=f32)               # (R, kvb)
    s += bx_ref[...]                                    # cached x bias
    s += mask_ref[0]                                    # additive padding bias

    m_prev = m_ref[...]                                 # (R, 128)
    l_prev = l_ref[...]                                 # (R, 128)
    m_new = jnp.maximum(m_prev, jnp.max(s, axis=-1, keepdims=True))
    alpha = jnp.exp(m_prev - m_new)
    p = jnp.exp(s - _lane_cast(m_new, s.shape[-1]))
    l_ref[...] = alpha * l_prev + jnp.sum(p, axis=-1, keepdims=True)
    acc_ref[...] = _lane_cast(alpha, dim) * acc_ref[...] + jnp.dot(
        p, v_tile, preferred_element_type=f32)
    m_ref[...] = m_new

    @pl.when(kv == pl.num_programs(1) - 1)
    def _finalize():
        inv_l = pl.reciprocal(l_ref[...], approx=True)
        heads = acc_ref[...] * _lane_cast(inv_l, dim) * hm_ref[...]    # (R, dim)
        merged = jnp.dot(sel_ref[...], heads,
                         preferred_element_type=f32)                   # (Nq, dim)
        o_ref[0] = (jnp.dot(merged, pw_ref[...],
                            preferred_element_type=f32)
                    + pb_ref[...]).astype(o_ref.dtype)


def fused_attention(query, k, v, rpe_x, rpe_y, mask_bias, ey, ex, hm_exp, sel,
                    qw_t, qb, pw_t, pb, *, num_heads, block_h, vmem_cap):
    B, Nq, dim = query.shape
    nH = num_heads
    R = nH * Nq
    h = rpe_y.shape[1]
    w = rpe_x.shape[2]
    kvb = block_h * w
    n_kv = h // block_h

    # Generation-aware scoped-VMEM sizing (double-buffered inputs + output
    # + scratch), capped below the physical capacity of the chip.
    est = 4 * (2 * Nq * dim
               + 4 * kvb * dim
               + 2 * R * w + 2 * block_h * R + 2 * kvb
               + (block_h + w) * kvb
               + R * dim + Nq * R
               + 4 * dim * dim + 4 * dim
               + 2 * Nq * dim
               + 2 * R * dim + R * kvb + 2 * R * 128)
    vmem_limit = int(min(max(2 * est, 32 << 20),
                         max(int(0.85 * vmem_cap), 32 << 20)))

    kernel = functools.partial(_attn_kernel, num_heads=nH)
    return pl.pallas_call(
        kernel,
        out_shape=jax.ShapeDtypeStruct((B, Nq, dim), query.dtype),
        grid_spec=pltpu.PrefetchScalarGridSpec(
            num_scalar_prefetch=0,
            grid=(B, n_kv),
            in_specs=[
                pl.BlockSpec((1, Nq, dim), lambda b, kv: (b, 0, 0)),       # query
                pl.BlockSpec((1, kvb, dim), lambda b, kv: (b, kv, 0)),     # k
                pl.BlockSpec((1, kvb, dim), lambda b, kv: (b, kv, 0)),     # v
                pl.BlockSpec((1, R, w), lambda b, kv: (b, 0, 0)),          # rpe_x
                pl.BlockSpec((1, block_h, R), lambda b, kv: (b, kv, 0)),   # rpe_y
                pl.BlockSpec((1, 1, kvb), lambda b, kv: (b, 0, kv)),       # mask
                pl.BlockSpec((block_h, kvb), lambda b, kv: (0, 0)),        # ey
                pl.BlockSpec((w, kvb), lambda b, kv: (0, 0)),              # ex
                pl.BlockSpec((R, dim), lambda b, kv: (0, 0)),              # head mask
                pl.BlockSpec((Nq, R), lambda b, kv: (0, 0)),               # head merge
                pl.BlockSpec((dim, dim), lambda b, kv: (0, 0)),            # q weight
                pl.BlockSpec((1, dim), lambda b, kv: (0, 0)),              # q bias
                pl.BlockSpec((dim, dim), lambda b, kv: (0, 0)),            # proj weight
                pl.BlockSpec((1, dim), lambda b, kv: (0, 0)),              # proj bias
            ],
            out_specs=pl.BlockSpec((1, Nq, dim), lambda b, kv: (b, 0, 0)),
            scratch_shapes=[
                pltpu.VMEM((R, dim), jnp.float32),     # block-diag q expansion
                pltpu.VMEM((R, kvb), jnp.float32),     # cached rpe_x expansion
                pltpu.VMEM((R, 128), jnp.float32),     # running max (128 lanes)
                pltpu.VMEM((R, 128), jnp.float32),     # running sum (128 lanes)
                pltpu.VMEM((R, dim), jnp.float32),     # output accumulator
            ]),
        compiler_params=pltpu.CompilerParams(
            dimension_semantics=("parallel", "arbitrary"),
            vmem_limit_bytes=vmem_limit),
    )(query, k, v, rpe_x, rpe_y, mask_bias, ey, ex, hm_exp, sel,
      qw_t, qb, pw_t, pb)


# ----------------------------------------------------------------------------
# Forward pass (Pallas kernels + cheap plain-JAX glue on tiny arrays)
# ----------------------------------------------------------------------------
def global_cross_attention(params, query, reference_points, k_in, v_in,
                           spatial_hw, input_padding_mask,
                           *, num_heads, feature_stride, target_kv=None):
    f32 = jnp.float32
    B, Nq, dim = query.shape
    nH = num_heads
    hd = dim // nH
    scale = hd ** -0.5
    h, w = int(spatial_hw[0]), int(spatial_hw[1])
    N = k_in.shape[1]

    # reference boxes -> corners (x1, y1, x2, y2) and per-axis deltas
    xy = reference_points[..., :2]
    wh = reference_points[..., 2:]
    ref_pts = jnp.concatenate([xy - wh / 2.0, xy + wh / 2.0], axis=-1)
    pos_x = jnp.linspace(0.5, w - 0.5, w, dtype=f32)[None, None, :, None] * feature_stride
    pos_y = jnp.linspace(0.5, h - 0.5, h, dtype=f32)[None, None, :, None] * feature_stride
    delta_x = ref_pts[..., 0::2] - pos_x          # (B, Nq, w, 2)
    delta_y = ref_pts[..., 1::2] - pos_y          # (B, Nq, h, 2)

    # --- both cpb MLPs in one stacked, lane-dense (head-major) pallas_call ---
    Mx, My = Nq * w, Nq * h
    Mpad = _round_up(max(Mx, My), 512)
    dx_t = jnp.transpose(delta_x, (0, 3, 1, 2)).reshape(B, 2, Mx)
    dy_t = jnp.transpose(delta_y, (0, 3, 1, 2)).reshape(B, 2, My)
    dx_t = jnp.pad(dx_t, ((0, 0), (0, 0), (0, Mpad - Mx)))
    dy_t = jnp.pad(dy_t, ((0, 0), (0, 0), (0, Mpad - My)))
    x_stack = jnp.stack([dx_t, dy_t], axis=0)                              # (2, B, 2, Mpad)
    w1_stack = jnp.stack([params["cpb1_w1"], params["cpb2_w1"]])           # (2, hidden, 2)
    b1_stack = jnp.stack([params["cpb1_b1"].reshape(-1, 1),
                          params["cpb2_b1"].reshape(-1, 1)])               # (2, hidden, 1)
    w2_stack = jnp.stack([params["cpb1_w2"], params["cpb2_w2"]])           # (2, nH, hidden)
    rpe = cpb_mlp_fused(x_stack, w1_stack, b1_stack, w2_stack)             # (2, B, nH, Mpad)
    # x bias comes out already head-major -> pure reshape, no transpose
    rpe_x = rpe[0, :, :, :Mx].reshape(B, nH, Nq, w).reshape(B, nH * Nq, w)
    # y bias needs a tiny (O(nH*Nq*h)) layout transpose so the KV grid slices rows
    rpe_y = rpe[1, :, :, :My].reshape(B, nH, Nq, h)
    rpe_y = jnp.transpose(rpe_y, (0, 3, 1, 2)).reshape(B, h, nH * Nq)

    # --- k & v projections fused, no stack copy through HBM ---
    k, v = kv_project(k_in.reshape(B * N, dim), v_in.reshape(B * N, dim),
                      params["k_w"].T, params["k_b"],
                      params["v_w"].T, params["v_b"])
    k = k.reshape(B, N, dim)
    v = v.reshape(B, N, dim)

    # padding mask folded once into an additive bias (matches torch's *-100)
    if input_padding_mask is None:
        mask_bias = jnp.zeros((B, 1, N), f32)
    else:
        mask_bias = (input_padding_mask.astype(f32) * (-100.0)).reshape(B, 1, N)

    # --- generation-aware KV tiling ---
    vmem_cap = _vmem_capacity_bytes()
    if target_kv is None:
        target_kv = 2048 if vmem_cap >= (96 << 20) else 1024
    max_kv = max(128, min((vmem_cap // 4) // (dim * 4 * 6), 8192))
    block_h = _pick_block_h(h, w, target_kv, max_kv)
    kvb = block_h * w

    # one-hot expansion matrices mapping local KV column -> (y, x) bias rows
    n_idx = np.arange(kvb)
    ey = jnp.asarray((np.arange(block_h)[:, None] == (n_idx // w)[None, :])
                     .astype(np.float32))                                  # (block_h, kvb)
    ex = jnp.asarray((np.arange(w)[:, None] == (n_idx % w)[None, :])
                     .astype(np.float32))                                  # (w, kvb)
    # head block mask / head-merge selector for the block-diagonal formulation
    row_head = np.repeat(np.arange(nH), Nq)
    col_head = np.arange(dim) // hd
    hm_exp = jnp.asarray((row_head[:, None] == col_head[None, :])
                         .astype(np.float32))                              # (nH*Nq, dim)
    sel = jnp.asarray(np.tile(np.eye(Nq, dtype=np.float32), (1, nH)))      # (Nq, nH*Nq)

    # scale folded into q weights; q + output projections fused into the kernel
    qw_t = params["q_w"].T * scale
    qb = (params["q_b"] * scale).reshape(1, dim)
    pw_t = params["proj_w"].T
    pb = params["proj_b"].reshape(1, dim)

    out = fused_attention(query, k, v, rpe_x, rpe_y, mask_bias, ey, ex,
                          hm_exp, sel, qw_t, qb, pw_t, pb,
                          num_heads=nH, block_h=block_h, vmem_cap=vmem_cap)
    # TODO(synk): attn_drop / proj_drop are nn.Dropout(p=0.0) -> identity; omitted.
    return out


# ----------------------------------------------------------------------------
# Pure-JAX reference (for validation)
# ----------------------------------------------------------------------------
def reference_forward(params, query, reference_points, k_in, v_in,
                      spatial_hw, input_padding_mask,
                      *, num_heads, feature_stride):
    dim = query.shape[-1]
    head_dim = dim // num_heads
    scale = head_dim ** -0.5
    h, w = int(spatial_hw[0]), int(spatial_hw[1])
    B, Nq = query.shape[0], query.shape[1]
    N = k_in.shape[1]

    xy = reference_points[..., :2]
    wh = reference_points[..., 2:]
    ref_pts = jnp.concatenate([xy - wh / 2.0, xy + wh / 2.0], axis=-1)
    pos_x = jnp.linspace(0.5, w - 0.5, w, dtype=jnp.float32)[None, None, :, None] * feature_stride
    pos_y = jnp.linspace(0.5, h - 0.5, h, dtype=jnp.float32)[None, None, :, None] * feature_stride
    delta_x = ref_pts[..., 0::2] - pos_x
    delta_y = ref_pts[..., 1::2] - pos_y

    def mlp(x, w1, b1, w2):
        return jnp.maximum(x @ w1.T + b1, 0.0) @ w2.T

    rpe_x = mlp(delta_x, params["cpb1_w1"], params["cpb1_b1"], params["cpb1_w2"])
    rpe_y = mlp(delta_y, params["cpb2_w1"], params["cpb2_b1"], params["cpb2_w2"])
    rpe = (rpe_x[:, :, None] + rpe_y[:, :, :, None]).reshape(B, Nq, h * w, num_heads)
    rpe = jnp.transpose(rpe, (0, 3, 1, 2))

    def lin(x, w_, b_):
        return x @ w_.T + b_

    k = lin(k_in, params["k_w"], params["k_b"]).reshape(B, N, num_heads, head_dim).transpose(0, 2, 1, 3)
    v = lin(v_in, params["v_w"], params["v_b"]).reshape(B, N, num_heads, head_dim).transpose(0, 2, 1, 3)
    q = lin(query, params["q_w"], params["q_b"]).reshape(B, Nq, num_heads, head_dim).transpose(0, 2, 1, 3)
    q = q * scale

    attn = jnp.einsum("bhqd,bhkd->bhqk", q, k) + rpe
    if input_padding_mask is not None:
        attn = attn + input_padding_mask.astype(attn.dtype)[:, None, None] * -100.0
    attn = jax.nn.softmax(attn, axis=-1)
    x = jnp.einsum("bhqk,bhkd->bhqd", attn, v).transpose(0, 2, 1, 3).reshape(B, Nq, dim)
    return lin(x, params["proj_w"], params["proj_b"])


# ----------------------------------------------------------------------------
# Deterministic parameter construction
# ----------------------------------------------------------------------------
def init_params(key, dim, num_heads, rpe_hidden_dim):
    ks = jax.random.split(key, 12)
    s = 0.02

    def wgt(k_, shape):
        return jax.random.normal(k_, shape, jnp.float32) * s

    return {
        "cpb1_w1": wgt(ks[0], (rpe_hidden_dim, 2)),
        "cpb1_b1": wgt(ks[1], (rpe_hidden_dim,)),
        "cpb1_w2": wgt(ks[2], (num_heads, rpe_hidden_dim)),
        "cpb2_w1": wgt(ks[3], (rpe_hidden_dim, 2)),
        "cpb2_b1": wgt(ks[4], (rpe_hidden_dim,)),
        "cpb2_w2": wgt(ks[5], (num_heads, rpe_hidden_dim)),
        "q_w": wgt(ks[6], (dim, dim)), "q_b": wgt(ks[7], (dim,)),
        "k_w": wgt(ks[8], (dim, dim)), "k_b": wgt(ks[9], (dim,)),
        "v_w": wgt(ks[10], (dim, dim)), "v_b": wgt(ks[11], (dim,)),
        "proj_w": wgt(jax.random.fold_in(key, 100), (dim, dim)),
        "proj_b": wgt(jax.random.fold_in(key, 101), (dim,)),
    }


# ----------------------------------------------------------------------------
if __name__ == "__main__":
    dim = 32
    num_heads = 4
    rpe_hidden_dim = 16
    feature_stride = 16
    B, Nq = 2, 8
    H = W = 16                      # N = 256
    N = H * W

    key = jax.random.PRNGKey(0)
    kp, k1, k2, k3, k4 = jax.random.split(key, 5)
    params = init_params(kp, dim, num_heads, rpe_hidden_dim)

    query = jax.random.normal(k1, (B, Nq, dim), jnp.float32)
    # reference points in absolute pixel coords (cx, cy, w, h)
    ref_xy = jax.random.uniform(k2, (B, Nq, 1, 2), jnp.float32) * (W * feature_stride)
    ref_wh = jax.random.uniform(k3, (B, Nq, 1, 2), jnp.float32) * 32.0 + 8.0
    reference_points = jnp.concatenate([ref_xy, ref_wh], axis=-1)
    k_input = jax.random.normal(k4, (B, N, dim), jnp.float32)
    v_input = jax.random.normal(jax.random.fold_in(key, 7), (B, N, dim), jnp.float32)
    spatial_shapes = np.array([[H, W]], dtype=np.int32)   # static single scale
    padding_mask = jnp.zeros((B, N), jnp.float32).at[1, -17:].set(1.0)

    # target_kv=128 -> 2 KV tiles so the online-softmax accumulation path and
    # the kv-dependent rpe_y / mask slicing are exercised at this small size.
    out = global_cross_attention(
        params, query, reference_points, k_input, v_input,
        spatial_shapes[0], padding_mask,
        num_heads=num_heads, feature_stride=feature_stride, target_kv=128)
    out = jax.block_until_ready(out)

    ref = reference_forward(
        params, query, reference_points, k_input, v_input,
        spatial_shapes[0], padding_mask,
        num_heads=num_heads, feature_stride=feature_stride)
    ref = jax.block_until_ready(ref)

    assert out.shape == (B, Nq, dim), out.shape
    np.testing.assert_allclose(np.asarray(out), np.asarray(ref), rtol=2e-3, atol=2e-3)
    print("KERNEL_OK")
</pallas_src>

<mosaic_0001>
module attributes {stable_mosaic.version = 11 : i64} {
  func.func @_cpb_kernel(%arg0: i32, %arg1: i32, %arg2: i32, %arg3: memref<1x1x2x512xf32, #tpu.memory_space<vmem>>, %arg4: memref<1x16x2xf32, #tpu.memory_space<vmem>>, %arg5: memref<1x16x1xf32, #tpu.memory_space<vmem>>, %arg6: memref<1x4x16xf32, #tpu.memory_space<vmem>>, %arg7: memref<1x1x4x512xf32, #tpu.memory_space<vmem>>) attributes {dimension_semantics = [#tpu.dimension_semantics<parallel>, #tpu.dimension_semantics<parallel>, #tpu.dimension_semantics<parallel>], iteration_bounds = array<i64: 2, 2, 1>, scalar_prefetch = 0 : i64, scratch_operands = 0 : i64, tpu.core_type = #tpu.core_type<tc>, window_params = [{transform_indices = @transform_0, window_bounds = array<i64: 1, 1, 2, 512>}, {transform_indices = @transform_1, window_bounds = array<i64: 1, 16, 2>}, {transform_indices = @transform_2, window_bounds = array<i64: 1, 16, 1>}, {transform_indices = @transform_3, window_bounds = array<i64: 1, 4, 16>}, {transform_indices = @transform_4, window_bounds = array<i64: 1, 1, 4, 512>}]} {
    %c0 = arith.constant 0 : index
    %c0_0 = arith.constant 0 : index
    %c0_1 = arith.constant 0 : index
    %0 = vector.load %arg4[%c0, %c0_0, %c0_1] : memref<1x16x2xf32, #tpu.memory_space<vmem>>, vector<1x16x2xf32>
    %1 = vector.shape_cast %0 : vector<1x16x2xf32> to vector<16x2xf32>
    %c0_2 = arith.constant 0 : index
    %c0_3 = arith.constant 0 : index
    %c0_4 = arith.constant 0 : index
    %c0_5 = arith.constant 0 : index
    %2 = vector.load %arg3[%c0_2, %c0_3, %c0_4, %c0_5] : memref<1x1x2x512xf32, #tpu.memory_space<vmem>>, vector<1x1x2x512xf32>
    %3 = vector.shape_cast %2 : vector<1x1x2x512xf32> to vector<2x512xf32>
    %cst = arith.constant dense<0.000000e+00> : vector<16x512xf32>
    %4 = tpu.matmul %1, %3, %cst {dimension_numbers = #tpu.dot_dimension_numbers<[1], [0], [0], [1], [0, 0, 1, 1], [], []>} : vector<16x2xf32>, vector<2x512xf32>, vector<16x512xf32> -> vector<16x512xf32>
    %c0_6 = arith.constant 0 : index
    %c0_7 = arith.constant 0 : index
    %c0_8 = arith.constant 0 : index
    %5 = vector.load %arg5[%c0_6, %c0_7, %c0_8] : memref<1x16x1xf32, #tpu.memory_space<vmem>>, vector<1x16x1xf32>
    %6 = vector.shape_cast %5 : vector<1x16x1xf32> to vector<16x1xf32>
    %7 = vector.broadcast %6 : vector<16x1xf32> to vector<16x512xf32>
    %8 = arith.addf %4, %7 : vector<16x512xf32>
    %cst_9 = arith.constant 0.000000e+00 : f32
    %9 = vector.broadcast %cst_9 : f32 to vector<16x512xf32>
    %10 = arith.maximumf %8, %9 : vector<16x512xf32>
    %c0_10 = arith.constant 0 : index
    %c0_11 = arith.constant 0 : index
    %c0_12 = arith.constant 0 : index
    %11 = vector.load %arg6[%c0_10, %c0_11, %c0_12] : memref<1x4x16xf32, #tpu.memory_space<vmem>>, vector<1x4x16xf32>
    %12 = vector.shape_cast %11 : vector<1x4x16xf32> to vector<4x16xf32>
    %cst_13 = arith.constant dense<0.000000e+00> : vector<4x512xf32>
    %13 = tpu.matmul %12, %10, %cst_13 {dimension_numbers = #tpu.dot_dimension_numbers<[1], [0], [0], [1], [0, 0, 1, 1], [], []>} : vector<4x16xf32>, vector<16x512xf32>, vector<4x512xf32> -> vector<4x512xf32>
    %c0_14 = arith.constant 0 : index
    %c0_15 = arith.constant 0 : index
    %c0_16 = arith.constant 0 : index
    %c0_17 = arith.constant 0 : index
    %14 = vector.load %arg7[%c0_14, %c0_15, %c0_16, %c0_17] : memref<1x1x4x512xf32, #tpu.memory_space<vmem>>, vector<1x1x4x512xf32>
    %15 = vector.shape_cast %14 : vector<1x1x4x512xf32> to vector<4x512xf32>
    %16 = vector.shape_cast %13 : vector<4x512xf32> to vector<1x1x4x512xf32>
    tpu.vector_store %arg7[%c0_14, %c0_15, %c0_16, %c0_17], %16 {strides = array<i32>} : memref<1x1x4x512xf32, #tpu.memory_space<vmem>>, vector<1x1x4x512xf32>,
    return
  }
  func.func @transform_0(%arg0: i32, %arg1: i32, %arg2: i32) -> (i32, i32, i32, i32) {
    %c0_i32 = arith.constant 0 : i32
    %c0_i32_0 = arith.constant 0 : i32
    return %arg0, %arg1, %c0_i32, %arg2 : i32, i32, i32, i32
  }
  func.func @transform_1(%arg0: i32, %arg1: i32, %arg2: i32) -> (i32, i32, i32) {
    %c0_i32 = arith.constant 0 : i32
    %c0_i32_0 = arith.constant 0 : i32
    %c0_i32_1 = arith.constant 0 : i32
    return %arg0, %c0_i32, %c0_i32_0 : i32, i32, i32
  }
  func.func @transform_2(%arg0: i32, %arg1: i32, %arg2: i32) -> (i32, i32, i32) {
    %c0_i32 = arith.constant 0 : i32
    %c0_i32_0 = arith.constant 0 : i32
    %c0_i32_1 = arith.constant 0 : i32
    return %arg0, %c0_i32, %c0_i32_0 : i32, i32, i32
  }
  func.func @transform_3(%arg0: i32, %arg1: i32, %arg2: i32) -> (i32, i32, i32) {
    %c0_i32 = arith.constant 0 : i32
    %c0_i32_0 = arith.constant 0 : i32
    %c0_i32_1 = arith.constant 0 : i32
    return %arg0, %c0_i32, %c0_i32_0 : i32, i32, i32
  }
  func.func @transform_4(%arg0: i32, %arg1: i32, %arg2: i32) -> (i32, i32, i32, i32) {
    %c0_i32 = arith.constant 0 : i32
    %c0_i32_0 = arith.constant 0 : i32
    return %arg0, %arg1, %c0_i32, %arg2 : i32, i32, i32, i32
  }
}

</mosaic_0001>

<llo_original>
// kernel: tpu_custom_call.1
$region0: #{tpu_custom_call.1}
  #allocation0 [shape = 'u32[]', space=smem, size = 0x4, offset = 0x4, fixed_abs, tag = 'smem constant byte address 0x4 - core index']
  #allocation1 [shape = 'u32[144,128]{1,0:T(1,128)}', space=vmem, size = 0x12000, scoped, tag = 'internal scratch']
  %s0 = inlined_call_operand.vmem [shape: f32[2,2,2,512], index: 0, kind: input, shape index: {}]
  %s1 = inlined_call_operand.vmem [shape: f32[2,16,2], index: 1, kind: input, shape index: {}]
  %s2 = inlined_call_operand.vmem [shape: f32[2,16,1], index: 2, kind: input, shape index: {}]
  %s3 = inlined_call_operand.vmem [shape: f32[2,4,16], index: 3, kind: input, shape index: {}]
  %s4 = inlined_call_operand.hbm [shape: f32[2,2,4,512], index: 4, kind: output, shape index: {}]
  %s5 = sld [smem:[#allocation0]]
  $region49: #{tpu_custom_call.1} parent=0
    _
  %s7 = ssub.s32 1, %s5
  %s8 = scalar_select 0, %s7, %s5
  $region1: #{tpu_custom_call.1} parent=0
    #allocation2 [shape = 'u8[16384]{0}', space=vmem, size = 0x4000, scoped, tag = 'output window, operand 0']
    #allocation3 [shape = 's32[2]{0}', space=sflag, size = 0x8, scoped, tag = 'scoped memory for tpu_custom_call.1']
    %9 = vsyncpa [#allocation3], 0
    %s10 = scalar_lea.sflag [#allocation3], 1
    %11 = vsyncpa %s10, 0
    loop: start=0, step=1, limit=6
    $region2: #{tpu_custom_call.1} parent=1 // loop_pre_header
      _
    $region3: #{tpu_custom_call.1} parent=1 // loop_header
      %s13 = sphi 0, %s17
      %p14 = scmp.ge.s32.totalorder %s13, 6
      %s20 = sphi 0, %s39
      %s21 = sphi 0, %s35
      %s22 = sphi 0, %s31
      %s23 = sphi 0, %s20
      %s24 = sphi 0, %s21
      %s25 = sphi 0, %s22
      %s26 = sphi 0, %s23
      %s27 = sphi 0, %s24
      %s28 = sphi 0, %s25
      %s46 = sphi 0, %s48
      %s49 = sphi 0, %s46
      %s50 = sphi 0, %s49
      %s66 = sphi 0, %s50
      %s72 = sphi 0, %s74
      %s75 = sphi 0, %s72
      %s76 = sphi 0, %s75
      %s92 = sphi 0, %s76
      %s98 = sphi 0, %s100
      %s101 = sphi 0, %s98
      %s102 = sphi 0, %s101
      %s118 = sphi 0, %s102
      %s124 = sphi 0, %s126
      %s127 = sphi 0, %s124
      %s128 = sphi 0, %s127
      %s144 = sphi 0, %s128
      %s154 = sphi 0, %s156
      %s157 = sphi 0, %s154
      %s158 = sphi 0, %s157
      %s174 = sphi 0, %s158
    $region4: #{tpu_custom_call.1} parent=1 // loop_header_branch
      %16 = sbr.rel (%p14) target = $region8
    $region5: #{tpu_custom_call.1} parent=1 // loop_body
      %s18 = ssub.s32 %s13, 1
      %s19 = ssub.s32 %s13, 2
      %s29 = sadd.s32 1, %s22
      %p30 = scmp.ge.s32.totalorder %s29, 1
      %s31 = scalar_select %p30, 0, %s29
      %s32 = sadd.s32 1, %s21
      %s33 = scalar_select %p30, %s32, %s21
      %p34 = scmp.ge.s32.totalorder %s33, 2
      %s35 = scalar_select %p34, 0, %s33
      %s36 = sadd.s32 1, %s20
      %s37 = scalar_select %p34, %s36, %s20
      %p38 = scmp.ge.s32.totalorder %s37, 2
      %s39 = scalar_select %p38, 0, %s37
      %s40 = ssub.s32 %s20, %s39
      %s41 = ssub.s32 %s21, %s35
      %s42 = sor.u32 %s40, %s41
      %s43 = ssub.s32 %s22, %s31
      %s44 = sor.u32 %s42, %s43
      %p45 = scmp.eq.s32.totalorder %s44, 0
      %s47 = sadd.s32 %s46, 1
      %s48 = scalar_select %p45, %s46, %s47
      %p51 = pneg %p45
      %p52 = scmp.eq.s32.totalorder %s13, 3
      %p53 = por %p51, %p52
      %p54 = scmp.ne.s32.totalorder %s46, %s49
      %p55 = scmp.eq.s32.totalorder %s13, 0
      %p56 = por %p54, %p55
      %p57 = scmp.ne.s32.totalorder %s46, %s49
      %p58 = scmp.eq.s32.totalorder %s18, 3
      %p59 = por %p57, %p58
      %p60 = scmp.ne.s32.totalorder %s49, %s50
      %p61 = scmp.eq.s32.totalorder %s18, 0
      %p62 = por %p60, %p61
      %p63 = scmp.ne.s32.totalorder %s49, %s50
      %p64 = scmp.eq.s32.totalorder %s19, 3
      %p65 = por %p63, %p64
      %p67 = scmp.ne.s32.totalorder %s50, %s66
      %p68 = scmp.eq.s32.totalorder %s19, 0
      %p69 = por %p67, %p68
      %s70 = ssub.s32 %s20, %s39
      %p71 = scmp.eq.s32.totalorder %s70, 0
      %s73 = sadd.s32 %s72, 1
      %s74 = scalar_select %p71, %s72, %s73
      %p77 = pneg %p71
      %p78 = scmp.eq.s32.totalorder %s13, 3
      %p79 = por %p77, %p78
      %p80 = scmp.ne.s32.totalorder %s72, %s75
      %p81 = scmp.eq.s32.totalorder %s13, 0
      %p82 = por %p80, %p81
      %p83 = scmp.ne.s32.totalorder %s72, %s75
      %p84 = scmp.eq.s32.totalorder %s18, 3
      %p85 = por %p83, %p84
      %p86 = scmp.ne.s32.totalorder %s75, %s76
      %p87 = scmp.eq.s32.totalorder %s18, 0
      %p88 = por %p86, %p87
      %p89 = scmp.ne.s32.totalorder %s75, %s76
      %p90 = scmp.eq.s32.totalorder %s19, 3
      %p91 = por %p89, %p90
      %p93 = scmp.ne.s32.totalorder %s76, %s92
      %p94 = scmp.eq.s32.totalorder %s19, 0
      %p95 = por %p93, %p94
      %s96 = ssub.s32 %s20, %s39
      %p97 = scmp.eq.s32.totalorder %s96, 0
      %s99 = sadd.s32 %s98, 1
      %s100 = scalar_select %p97, %s98, %s99
      %p103 = pneg %p97
      %p104 = scmp.eq.s32.totalorder %s13, 3
      %p105 = por %p103, %p104
      %p106 = scmp.ne.s32.totalorder %s98, %s101
      %p107 = scmp.eq.s32.totalorder %s13, 0
      %p108 = por %p106, %p107
      %p109 = scmp.ne.s32.totalorder %s98, %s101
      %p110 = scmp.eq.s32.totalorder %s18, 3
      %p111 = por %p109, %p110
      %p112 = scmp.ne.s32.totalorder %s101, %s102
      %p113 = scmp.eq.s32.totalorder %s18, 0
      %p114 = por %p112, %p113
      %p115 = scmp.ne.s32.totalorder %s101, %s102
      %p116 = scmp.eq.s32.totalorder %s19, 3
      %p117 = por %p115, %p116
      %p119 = scmp.ne.s32.totalorder %s102, %s118
      %p120 = scmp.eq.s32.totalorder %s19, 0
      %p121 = por %p119, %p120
      %s122 = ssub.s32 %s20, %s39
      %p123 = scmp.eq.s32.totalorder %s122, 0
      %s125 = sadd.s32 %s124, 1
      %s126 = scalar_select %p123, %s124, %s125
      %p129 = pneg %p123
      %p130 = scmp.eq.s32.totalorder %s13, 3
      %p131 = por %p129, %p130
      %p132 = scmp.ne.s32.totalorder %s124, %s127
      %p133 = scmp.eq.s32.totalorder %s13, 0
      %p134 = por %p132, %p133
      %p135 = scmp.ne.s32.totalorder %s124, %s127
      %p136 = scmp.eq.s32.totalorder %s18, 3
      %p137 = por %p135, %p136
      %p138 = scmp.ne.s32.totalorder %s127, %s128
      %p139 = scmp.eq.s32.totalorder %s18, 0
      %p140 = por %p138, %p139
      %p141 = scmp.ne.s32.totalorder %s127, %s128
      %p142 = scmp.eq.s32.totalorder %s19, 3
      %p143 = por %p141, %p142
      %p145 = scmp.ne.s32.totalorder %s128, %s144
      %p146 = scmp.eq.s32.totalorder %s19, 0
      %p147 = por %p145, %p146
      %s148 = ssub.s32 %s20, %s39
      %s149 = ssub.s32 %s21, %s35
      %s150 = sor.u32 %s148, %s149
      %s151 = ssub.s32 %s22, %s31
      %s152 = sor.u32 %s150, %s151
      %p153 = scmp.eq.s32.totalorder %s152, 0
      %s155 = sadd.s32 %s154, 1
      %s156 = scalar_select %p153, %s154, %s155
      %p159 = pneg %p153
      %p160 = scmp.eq.s32.totalorder %s13, 3
      %p161 = por %p159, %p160
      %p162 = scmp.ne.s32.totalorder %s154, %s157
      %p163 = scmp.eq.s32.totalorder %s13, 0
      %p164 = por %p162, %p163
      %p165 = scmp.ne.s32.totalorder %s154, %s157
      %p166 = scmp.eq.s32.totalorder %s18, 3
      %p167 = por %p165, %p166
      %p168 = scmp.ne.s32.totalorder %s157, %s158
      %p169 = scmp.eq.s32.totalorder %s18, 0
      %p170 = por %p168, %p169
      %p171 = scmp.ne.s32.totalorder %s157, %s158
      %p172 = scmp.eq.s32.totalorder %s19, 3
      %p173 = por %p171, %p172
      %p175 = scmp.ne.s32.totalorder %s158, %s174
      %p176 = scmp.eq.s32.totalorder %s19, 0
      %p177 = por %p175, %p176
      %p178 = scmp.le.s32.totalorder 1, %s13
      %p179 = scmp.lt.s32.totalorder %s13, 5
      %p180 = pnand %p178, %p179
      %p181 = pneg %p180
      // Predicated region
      $region9: #{tpu_custom_call.1} parent=5 // pred_check
        _
      $region10: #{tpu_custom_call.1} parent=5 // pred_check_branch
        %183 = sbr.rel (%p180) target = $region12
      $region11: #{tpu_custom_call.1} parent=5 // pred_region
        %s184 = ssub.s32 %s13, 1
      $region12: #{tpu_custom_call.1} parent=5 // pred_fallthru
        _
      %p185 = scmp.lt.s32.totalorder %s13, 4
      // Predicated region
      $region13: #{tpu_custom_call.1} parent=5 // pred_check
        %p186 = pneg %p185
      $region14: #{tpu_custom_call.1} parent=5 // pred_check_branch
        %188 = sbr.rel (%p186) target = $region16
      $region15: #{tpu_custom_call.1} parent=5 // pred_region
        // Predicated region
        $region17: #{tpu_custom_call.1} parent=15 // pred_check
          %p189 = pneg %p56
        $region18: #{tpu_custom_call.1} parent=15 // pred_check_branch
          %191 = sbr.rel (%p189) target = $region20
        $region19: #{tpu_custom_call.1} parent=15 // pred_region
          %s192 = smul.u32 4, %s22
          %p193 = scmp.lt.s32.totalorder %s20, 1
          %s194 = scalar_select %p193, %s20, 1
          %p195 = scmp.lt.s32.totalorder %s21, 1
          %s196 = scalar_select %p195, %s21, 1
          %p197 = scmp.lt.s32.totalorder %s192, 3
          %s198 = scalar_select %p197, %s192, 3
          %s199 = smul.addr %s196, 4
          %s200 = sadd.s32 %s198, %s199
          %s201 = smul.addr %s194, 8
          %s202 = sadd.s32 %s200, %s201
          %s203 = smul.addr %s202, 2
          %s204 = scalar_lea.vmem %s0, %s203
          %s205 = smul.u32 4, %s22
        $region20: #{tpu_custom_call.1} parent=15 // pred_fallthru
          _
        // Predicated region
        $region21: #{tpu_custom_call.1} parent=15 // pred_check
          %p206 = pneg %p82
        $region22: #{tpu_custom_call.1} parent=15 // pred_check_branch
          %208 = sbr.rel (%p206) target = $region24
        $region23: #{tpu_custom_call.1} parent=15 // pred_region
          %p209 = scmp.lt.s32.totalorder %s20, 1
          %s210 = scalar_select %p209, %s20, 1
          %s211 = smul.addr %s210, 2
          %s212 = smul.addr %s211, 8
          %s213 = scalar_lea.vmem %s1, %s212
        $region24: #{tpu_custom_call.1} parent=15 // pred_fallthru
          _
        // Predicated region
        $region25: #{tpu_custom_call.1} parent=15 // pred_check
          %p214 = pneg %p108
        $region26: #{tpu_custom_call.1} parent=15 // pred_check_branch
          %216 = sbr.rel (%p214) target = $region28
        $region27: #{tpu_custom_call.1} parent=15 // pred_region
          %p217 = scmp.lt.s32.totalorder %s20, 1
          %s218 = scalar_select %p217, %s20, 1
          %s219 = smul.addr %s218, 2
          %s220 = smul.addr %s219, 8
          %s221 = scalar_lea.vmem %s2, %s220
        $region28: #{tpu_custom_call.1} parent=15 // pred_fallthru
          _
        // Predicated region
        $region29: #{tpu_custom_call.1} parent=15 // pred_check
          %p222 = pneg %p134
        $region30: #{tpu_custom_call.1} parent=15 // pred_check_branch
          %224 = sbr.rel (%p222) target = $region32
        $region31: #{tpu_custom_call.1} parent=15 // pred_region
          %p225 = scmp.lt.s32.totalorder %s20, 1
          %s226 = scalar_select %p225, %s20, 1
          %s227 = smul.addr %s226, 4
          %s228 = scalar_lea.vmem %s3, %s227
        $region32: #{tpu_custom_call.1} parent=15 // pred_fallthru
          _
      $region16: #{tpu_custom_call.1} parent=5 // pred_fallthru
        _
      %p229 = scmp.le.s32.totalorder 1, %s13
      %p230 = scmp.lt.s32.totalorder %s13, 5
      %p231 = pnand %p229, %p230
      %p232 = pneg %p231
      // Predicated region
      $region33: #{tpu_custom_call.1} parent=5 // pred_check
        _
      $region34: #{tpu_custom_call.1} parent=5 // pred_check_branch
        %234 = sbr.rel (%p231) target = $region36
      $region35: #{tpu_custom_call.1} parent=5 // pred_region
        %s235 = ssub.s32 %s13, 1
        %s236 = smul.u32 4, %s25
        %p237 = scmp.lt.s32.totalorder %s23, 1
        %s238 = scalar_select %p237, %s23, 1
        %p239 = scmp.lt.s32.totalorder %s24, 1
        %s240 = scalar_select %p239, %s24, 1
        %p241 = scmp.lt.s32.totalorder %s236, 3
        %s242 = scalar_select %p241, %s236, 3
        %s243 = smul.addr %s240, 4
        %s244 = sadd.s32 %s242, %s243
        %s245 = smul.addr %s238, 8
        %s246 = sadd.s32 %s244, %s245
        %s247 = smul.addr %s246, 2
        %s248 = scalar_lea.vmem %s0, %s247
        %p249 = pneg %p62
        %p250 = pneg %p59
        %p251 = scmp.lt.s32.totalorder %s23, 1
        %s252 = scalar_select %p251, %s23, 1
        %s253 = smul.addr %s252, 2
        %s254 = smul.addr %s253, 8
        %s255 = scalar_lea.vmem %s1, %s254
        %p256 = pneg %p88
        %p257 = pneg %p85
        %p258 = scmp.lt.s32.totalorder %s23, 1
        %s259 = scalar_select %p258, %s23, 1
        %s260 = smul.addr %s259, 2
        %s261 = smul.addr %s260, 8
        %s262 = scalar_lea.vmem %s2, %s261
        %p263 = pneg %p114
        %p264 = pneg %p111
        %p265 = scmp.lt.s32.totalorder %s23, 1
        %s266 = scalar_select %p265, %s23, 1
        %s267 = smul.addr %s266, 4
        %s268 = scalar_lea.vmem %s3, %s267
        %p269 = pneg %p140
        %p270 = pneg %p137
        %p271 = pneg %p170
        %p272 = pneg %p167
        %s273 = sand.u32 %s157, 1
        %s274 = scalar_lea.sflag [#allocation3], %s273
        %s275 = sand.u32 %s157, 1
        %s276 = smul.addr %s275, 16
        %s277 = scalar_lea.vmem [#allocation2], %s276
        %s278 = smul.u32 4, %s25
        %p279 = scmp.lt.s32.totalorder %s23, 1
        %s280 = scalar_select %p279, %s23, 1
        %p281 = scmp.lt.s32.totalorder %s24, 1
        %s282 = scalar_select %p281, %s24, 1
        %p283 = scmp.lt.s32.totalorder %s278, 3
        %s284 = scalar_select %p283, %s278, 3
        %s285 = smul.addr %s282, 4
        %s286 = sadd.s32 %s284, %s285
        %s287 = smul.addr %s280, 8
        %s288 = sadd.s32 %s286, %s287
        %s289 = smul.addr %s288, 2
        %s290 = scalar_lea.vmem %s0, %s289
        %s291 = smul.u32 4, %s25
        %p292 = scmp.lt.s32.totalorder %s23, 1
        %s293 = scalar_select %p292, %s23, 1
        %s294 = smul.addr %s293, 2
        %s295 = smul.addr %s294, 8
        %s296 = scalar_lea.vmem %s1, %s295
        %p297 = scmp.lt.s32.totalorder %s23, 1
        %s298 = scalar_select %p297, %s23, 1
        %s299 = smul.addr %s298, 2
        %s300 = smul.addr %s299, 8
        %s301 = scalar_lea.vmem %s2, %s300
        %p302 = scmp.lt.s32.totalorder %s23, 1
        %s303 = scalar_select %p302, %s23, 1
        %s304 = smul.addr %s303, 4
        %s305 = scalar_lea.vmem %s3, %s304
        %s306 = smul.u32 4, %s25
        %v307 = vld [vmem:[%s296] sm:$0xff]
        %v308 = vld [vmem:[%s296 + $0x8] sm:$0xff]
        %v309 = vld [vmem:[%s290] sm:$0xff]
        %v310 = vld [vmem:[%s301] sm:$0xff]
        %v311 = vld [vmem:[%s301 + $0x8] sm:$0xff]
        %313 = vset.pattern.permute.xlu0 0
        %314 = vperm.xlu0 %313, %v310
        %v315 = vpop.permute.xlu0 %314
        %318 = vset.pattern.permute.xlu0 0
        %319 = vperm.xlu0 %318, %v311
        %v320 = vpop.permute.xlu0 %319
        %v323 = vcombine.high %v309, %v309
        %v325 = vunpack.c.l.s4 1983009808
        %v326 = vunpack.c.0.s8 %v325
        %v327 = vlaneseq
        %v328 = vshrl.u32 %v327, 7
        %v329 = vsub.s32 %v326, %v328
        %v330 = vrot.slane %v309, %v329
        %v332 = vunpack.c.l.s4 1983009808
        %v333 = vunpack.c.0.s8 %v332
        %v334 = vlaneseq
        %v335 = vshrl.u32 %v334, 7
        %v336 = vsub.s32 %v333, %v335
        %v337 = vrot.slane %v323, %v336
        %v338 = vcombine.high %v330, %v330
        %v339 = vcombine.high %v337, %v337
        %vm340 = vcmask 15360
        %v342 = vsel %vm340, %v307, 0
        %v345 = vsel %vm340, %v308, 0
        %vm347 = vcmask 1041408
        %v348 = vsel %vm347, %v330, 0
        %v350 = vsel %vm347, %v338, 0
        %v352 = vsel %vm347, %v337, 0
        %v354 = vsel %vm347, %v339, 0
        %356 = vmatprep.subr.mxu0 %v350
        %357 = vmatpush1.msra.mxu0 %v348
        %358 = vmatprep.subr.mxu0 0.0
        %359 = vmatpush1.msra.mxu0 0.0
        %360 = vmatprep.subr.mxu0 0.0
        %361 = vmatpush1.msra.mxu0 0.0
        %362 = vmatprep.subr.mxu0 0.0
        %363 = vmatpush1.msra.mxu0 0.0
        %364 = vmatprep.subr.mxu0 0.0
        %365 = vmatpush1.msra.mxu0 0.0
        %366 = vmatprep.subr.mxu0 0.0
        %367 = vmatpush1.msra.mxu0 0.0
        %368 = vmatprep.subr.mxu0 0.0
        %369 = vmatpush1.msra.mxu0 0.0
        %370 = vmatprep.subr.mxu0 0.0
        %371 = vmatpush1.msra.mxu0 0.0
        %372 = vmatprep.subr.mxu0 0.0
        %373 = vmatpush1.msra.mxu0 0.0
        %374 = vmatprep.subr.mxu0 0.0
        %375 = vmatpush1.msra.mxu0 0.0
        %376 = vmatprep.subr.mxu0 0.0
        %377 = vmatpush1.msra.mxu0 0.0
        %378 = vmatprep.subr.mxu0 0.0
        %379 = vmatpush1.msra.mxu0 0.0
        %380 = vmatprep.subr.mxu0 0.0
        %381 = vmatpush1.msra.mxu0 0.0
        %382 = vmatprep.subr.mxu0 0.0
        %383 = vmatpush1.msra.mxu0 0.0
        %384 = vmatprep.subr.mxu0 0.0
        %385 = vmatpush1.msra.mxu0 0.0
        %386 = vmatprep.subr.mxu0 0.0
        %387 = vmatpush1.msra.mxu0 0.0
        %388 = vmatprep.subr.mxu0 0.0
        %389 = vmatpush1.msra.mxu0 0.0
        %390 = vmatprep.subr.mxu0 0.0
        %391 = vmatpush1.msra.mxu0 0.0
        %392 = vmatprep.subr.mxu0 0.0
        %393 = vmatpush1.msra.mxu0 0.0
        %394 = vmatprep.subr.mxu0 0.0
        %395 = vmatpush1.msra.mxu0 0.0
        %396 = vmatprep.subr.mxu0 0.0
        %397 = vmatpush1.msra.mxu0 0.0
        %398 = vmatprep.subr.mxu0 0.0
        %399 = vmatpush1.msra.mxu0 0.0
        %400 = vmatprep.subr.mxu0 0.0
        %401 = vmatpush1.msra.mxu0 0.0
        %402 = vmatprep.subr.mxu0 0.0
        %403 = vmatpush1.msra.mxu0 0.0
        %404 = vmatprep.subr.mxu0 0.0
        %405 = vmatpush1.msra.mxu0 0.0
        %406 = vmatprep.subr.mxu0 0.0
        %407 = vmatpush1.msra.mxu0 0.0
        %408 = vmatprep.subr.mxu0 0.0
        %409 = vmatpush1.msra.mxu0 0.0
        %410 = vmatprep.subr.mxu0 0.0
        %411 = vmatpush1.msra.mxu0 0.0
        %412 = vmatprep.subr.mxu0 0.0
        %413 = vmatpush1.msra.mxu0 0.0
        %414 = vmatprep.subr.mxu0 0.0
        %415 = vmatpush1.msra.mxu0 0.0
        %416 = vmatprep.subr.mxu0 0.0
        %417 = vmatpush1.msra.mxu0 0.0
        %418 = vmatprep.subr.mxu0 0.0
        %419 = vmatpush1.msra.mxu0 0.0
        %420 = vmatprep.mubr.f32.mxu0 0.0
        %421 = vmatmul.mubr.f32.gmra.mrb[0].mxu0 %v342
        %v422 = vpop.f32.mrb[0].mxu0
        %v423 = vadd.f32 %v315, %v422
        %v424 = vpop.f32.mrb[0].mxu0
        %v425 = vadd.f32 %v315, %v424
        %426 = vmatprep.mubr.f32.mxu0 0.0
        %427 = vmatmul.mubr.f32.gmra.mrb[0].mxu0 %v345
        %v428 = vpop.f32.mrb[0].mxu0
        %v429 = vadd.f32 %v320, %v428
        %v430 = vpop.f32.mrb[0].mxu0
        %v431 = vadd.f32 %v320, %v430
        %432 = vdwg.mxu0
        %433 = vmatprep.subr.mxu0 %v354
        %434 = vmatpush1.msra.mxu0 %v352
        %435 = vmatprep.subr.mxu0 0.0
        %436 = vmatpush1.msra.mxu0 0.0
        %437 = vmatprep.subr.mxu0 0.0
        %438 = vmatpush1.msra.mxu0 0.0
        %439 = vmatprep.subr.mxu0 0.0
        %440 = vmatpush1.msra.mxu0 0.0
        %441 = vmatprep.subr.mxu0 0.0
        %442 = vmatpush1.msra.mxu0 0.0
        %443 = vmatprep.subr.mxu0 0.0
        %444 = vmatpush1.msra.mxu0 0.0
        %445 = vmatprep.subr.mxu0 0.0
        %446 = vmatpush1.msra.mxu0 0.0
        %447 = vmatprep.subr.mxu0 0.0
        %448 = vmatpush1.msra.mxu0 0.0
        %449 = vmatprep.subr.mxu0 0.0
        %450 = vmatpush1.msra.mxu0 0.0
        %451 = vmatprep.subr.mxu0 0.0
        %452 = vmatpush1.msra.mxu0 0.0
        %453 = vmatprep.subr.mxu0 0.0
        %454 = vmatpush1.msra.mxu0 0.0
        %455 = vmatprep.subr.mxu0 0.0
        %456 = vmatpush1.msra.mxu0 0.0
        %457 = vmatprep.subr.mxu0 0.0
        %458 = vmatpush1.msra.mxu0 0.0
        %459 = vmatprep.subr.mxu0 0.0
        %460 = vmatpush1.msra.mxu0 0.0
        %461 = vmatprep.subr.mxu0 0.0
        %462 = vmatpush1.msra.mxu0 0.0
        %463 = vmatprep.subr.mxu0 0.0
        %464 = vmatpush1.msra.mxu0 0.0
        %465 = vmatprep.subr.mxu0 0.0
        %466 = vmatpush1.msra.mxu0 0.0
        %467 = vmatprep.subr.mxu0 0.0
        %468 = vmatpush1.msra.mxu0 0.0
        %469 = vmatprep.subr.mxu0 0.0
        %470 = vmatpush1.msra.mxu0 0.0
        %471 = vmatprep.subr.mxu0 0.0
        %472 = vmatpush1.msra.mxu0 0.0
        %473 = vmatprep.subr.mxu0 0.0
        %474 = vmatpush1.msra.mxu0 0.0
        %475 = vmatprep.subr.mxu0 0.0
        %476 = vmatpush1.msra.mxu0 0.0
        %477 = vmatprep.subr.mxu0 0.0
        %478 = vmatpush1.msra.mxu0 0.0
        %479 = vmatprep.subr.mxu0 0.0
        %480 = vmatpush1.msra.mxu0 0.0
        %481 = vmatprep.subr.mxu0 0.0
        %482 = vmatpush1.msra.mxu0 0.0
        %483 = vmatprep.subr.mxu0 0.0
        %484 = vmatpush1.msra.mxu0 0.0
        %485 = vmatprep.subr.mxu0 0.0
        %486 = vmatpush1.msra.mxu0 0.0
        %487 = vmatprep.subr.mxu0 0.0
        %488 = vmatpush1.msra.mxu0 0.0
        %489 = vmatprep.subr.mxu0 0.0
        %490 = vmatpush1.msra.mxu0 0.0
        %491 = vmatprep.subr.mxu0 0.0
        %492 = vmatpush1.msra.mxu0 0.0
        %493 = vmatprep.subr.mxu0 0.0
        %494 = vmatpush1.msra.mxu0 0.0
        %495 = vmatprep.subr.mxu0 0.0
        %496 = vmatpush1.msra.mxu0 0.0
        %497 = vmatprep.mubr.f32.mxu0 0.0
        %498 = vmatmul.mubr.f32.gmra.mrb[0].mxu0 %v342
        %v499 = vpop.f32.mrb[0].mxu0
        %v500 = vadd.f32 %v315, %v499
        %v501 = vpop.f32.mrb[0].mxu0
        %v502 = vadd.f32 %v315, %v501
        %503 = vmatprep.mubr.f32.mxu0 0.0
        %504 = vmatmul.mubr.f32.gmra.mrb[0].mxu0 %v345
        %v505 = vpop.f32.mrb[0].mxu0
        %v506 = vadd.f32 %v320, %v505
        %v507 = vpop.f32.mrb[0].mxu0
        %v508 = vadd.f32 %v320, %v507
        %509 = vdwg.mxu0
        %v510 = vmax.f32 %v423, 0.0
        %v511 = vmax.f32 %v425, 0.0
        %v512 = vmax.f32 %v500, 0.0
        %v513 = vmax.f32 %v502, 0.0
        %v514 = vmax.f32 %v429, 0.0
        %v515 = vmax.f32 %v431, 0.0
        %v516 = vmax.f32 %v506, 0.0
        %v517 = vmax.f32 %v508, 0.0
        %v518 = vld [vmem:[%s305] sm:$0xf]
        %vm519 = vcmask 130048
        %v521 = vsel %vm519, %v518, 0
        %523 = vmatprep.subr.mxu0 %v511
        %524 = vmatpush1.msra.mxu0 %v510
        %525 = vmatprep.subr.mxu0 %v515
        %526 = vmatpush1.msra.mxu0 %v514
        %527 = vmatprep.subr.mxu0 0.0
        %528 = vmatpush1.msra.mxu0 0.0
        %529 = vmatprep.subr.mxu0 0.0
        %530 = vmatpush1.msra.mxu0 0.0
        %531 = vmatprep.subr.mxu0 0.0
        %532 = vmatpush1.msra.mxu0 0.0
        %533 = vmatprep.subr.mxu0 0.0
        %534 = vmatpush1.msra.mxu0 0.0
        %535 = vmatprep.subr.mxu0 0.0
        %536 = vmatpush1.msra.mxu0 0.0
        %537 = vmatprep.subr.mxu0 0.0
        %538 = vmatpush1.msra.mxu0 0.0
        %539 = vmatprep.subr.mxu0 0.0
        %540 = vmatpush1.msra.mxu0 0.0
        %541 = vmatprep.subr.mxu0 0.0
        %542 = vmatpush1.msra.mxu0 0.0
        %543 = vmatprep.subr.mxu0 0.0
        %544 = vmatpush1.msra.mxu0 0.0
        %545 = vmatprep.subr.mxu0 0.0
        %546 = vmatpush1.msra.mxu0 0.0
        %547 = vmatprep.subr.mxu0 0.0
        %548 = vmatpush1.msra.mxu0 0.0
        %549 = vmatprep.subr.mxu0 0.0
        %550 = vmatpush1.msra.mxu0 0.0
        %551 = vmatprep.subr.mxu0 0.0
        %552 = vmatpush1.msra.mxu0 0.0
        %553 = vmatprep.subr.mxu0 0.0
        %554 = vmatpush1.msra.mxu0 0.0
        %555 = vmatprep.subr.mxu0 0.0
        %556 = vmatpush1.msra.mxu0 0.0
        %557 = vmatprep.subr.mxu0 0.0
        %558 = vmatpush1.msra.mxu0 0.0
        %559 = vmatprep.subr.mxu0 0.0
        %560 = vmatpush1.msra.mxu0 0.0
        %561 = vmatprep.subr.mxu0 0.0
        %562 = vmatpush1.msra.mxu0 0.0
        %563 = vmatprep.subr.mxu0 0.0
        %564 = vmatpush1.msra.mxu0 0.0
        %565 = vmatprep.subr.mxu0 0.0
        %566 = vmatpush1.msra.mxu0 0.0
        %567 = vmatprep.subr.mxu0 0.0
        %568 = vmatpush1.msra.mxu0 0.0
        %569 = vmatprep.subr.mxu0 0.0
        %570 = vmatpush1.msra.mxu0 0.0
        %571 = vmatprep.subr.mxu0 0.0
        %572 = vmatpush1.msra.mxu0 0.0
        %573 = vmatprep.subr.mxu0 0.0
        %574 = vmatpush1.msra.mxu0 0.0
        %575 = vmatprep.subr.mxu0 0.0
        %576 = vmatpush1.msra.mxu0 0.0
        %577 = vmatprep.subr.mxu0 0.0
        %578 = vmatpush1.msra.mxu0 0.0
        %579 = vmatprep.subr.mxu0 0.0
        %580 = vmatpush1.msra.mxu0 0.0
        %581 = vmatprep.subr.mxu0 0.0
        %582 = vmatpush1.msra.mxu0 0.0
        %583 = vmatprep.subr.mxu0 0.0
        %584 = vmatpush1.msra.mxu0 0.0
        %585 = vmatprep.subr.mxu0 0.0
        %586 = vmatpush1.msra.mxu0 0.0
        %587 = vmatprep.mubr.f32.mxu0 0.0
        %588 = vmatmul.mubr.f32.gmra.mrb[0].mxu0 %v521
        %v589 = vpop.f32.mrb[0].mxu0
        %v590 = vadd.f32 0.0, %v589
        %v591 = vpop.f32.mrb[0].mxu0
        %v592 = vadd.f32 0.0, %v591
        %593 = vdwg.mxu0
        %594 = vmatprep.subr.mxu0 %v513
        %595 = vmatpush1.msra.mxu0 %v512
        %596 = vmatprep.subr.mxu0 %v517
        %597 = vmatpush1.msra.mxu0 %v516
        %598 = vmatprep.subr.mxu0 0.0
        %599 = vmatpush1.msra.mxu0 0.0
        %600 = vmatprep.subr.mxu0 0.0
        %601 = vmatpush1.msra.mxu0 0.0
        %602 = vmatprep.subr.mxu0 0.0
        %603 = vmatpush1.msra.mxu0 0.0
        %604 = vmatprep.subr.mxu0 0.0
        %605 = vmatpush1.msra.mxu0 0.0
        %606 = vmatprep.subr.mxu0 0.0
        %607 = vmatpush1.msra.mxu0 0.0
        %608 = vmatprep.subr.mxu0 0.0
        %609 = vmatpush1.msra.mxu0 0.0
        %610 = vmatprep.subr.mxu0 0.0
        %611 = vmatpush1.msra.mxu0 0.0
        %612 = vmatprep.subr.mxu0 0.0
        %613 = vmatpush1.msra.mxu0 0.0
        %614 = vmatprep.subr.mxu0 0.0
        %615 = vmatpush1.msra.mxu0 0.0
        %616 = vmatprep.subr.mxu0 0.0
        %617 = vmatpush1.msra.mxu0 0.0
        %618 = vmatprep.subr.mxu0 0.0
        %619 = vmatpush1.msra.mxu0 0.0
        %620 = vmatprep.subr.mxu0 0.0
        %621 = vmatpush1.msra.mxu0 0.0
        %622 = vmatprep.subr.mxu0 0.0
        %623 = vmatpush1.msra.mxu0 0.0
        %624 = vmatprep.subr.mxu0 0.0
        %625 = vmatpush1.msra.mxu0 0.0
        %626 = vmatprep.subr.mxu0 0.0
        %627 = vmatpush1.msra.mxu0 0.0
        %628 = vmatprep.subr.mxu0 0.0
        %629 = vmatpush1.msra.mxu0 0.0
        %630 = vmatprep.subr.mxu0 0.0
        %631 = vmatpush1.msra.mxu0 0.0
        %632 = vmatprep.subr.mxu0 0.0
        %633 = vmatpush1.msra.mxu0 0.0
        %634 = vmatprep.subr.mxu0 0.0
        %635 = vmatpush1.msra.mxu0 0.0
        %636 = vmatprep.subr.mxu0 0.0
        %637 = vmatpush1.msra.mxu0 0.0
        %638 = vmatprep.subr.mxu0 0.0
        %639 = vmatpush1.msra.mxu0 0.0
        %640 = vmatprep.subr.mxu0 0.0
        %641 = vmatpush1.msra.mxu0 0.0
        %642 = vmatprep.subr.mxu0 0.0
        %643 = vmatpush1.msra.mxu0 0.0
        %644 = vmatprep.subr.mxu0 0.0
        %645 = vmatpush1.msra.mxu0 0.0
        %646 = vmatprep.subr.mxu0 0.0
        %647 = vmatpush1.msra.mxu0 0.0
        %648 = vmatprep.subr.mxu0 0.0
        %649 = vmatpush1.msra.mxu0 0.0
        %650 = vmatprep.subr.mxu0 0.0
        %651 = vmatpush1.msra.mxu0 0.0
        %652 = vmatprep.subr.mxu0 0.0
        %653 = vmatpush1.msra.mxu0 0.0
        %654 = vmatprep.subr.mxu0 0.0
        %655 = vmatpush1.msra.mxu0 0.0
        %656 = vmatprep.subr.mxu0 0.0
        %657 = vmatpush1.msra.mxu0 0.0
        %658 = vmatprep.mubr.f32.mxu0 0.0
        %659 = vmatmul.mubr.f32.gmra.mrb[0].mxu0 %v521
        %v660 = vpop.f32.mrb[0].mxu0
        %v661 = vadd.f32 0.0, %v660
        %v662 = vpop.f32.mrb[0].mxu0
        %v663 = vadd.f32 0.0, %v662
        %664 = vdwg.mxu0
        %v669 = vcombine.low %v590, %v592
        %v670 = vcombine.low %v661, %v663
        %673 = vst [vmem:[%s277] sm:$0xff] %v669
        %674 = vst [vmem:[%s277 + $0x8] sm:$0xff] %v670
        %s675 = sand.u32 %s157, 1
        %s676 = scalar_lea.sflag [#allocation3], %s675
        %s677 = sand.u32 %s157, 1
        %s678 = smul.addr %s677, 16
        %s679 = scalar_lea.vmem [#allocation2], %s678
        // Predicated region
        $region37: #{tpu_custom_call.1} parent=35 // pred_check
          %p680 = pneg %p167
        $region38: #{tpu_custom_call.1} parent=35 // pred_check_branch
          %682 = sbr.rel (%p680) target = $region40
        $region39: #{tpu_custom_call.1} parent=35 // pred_region
          %s683 = smul.u32 4, %s25
          %s685 = ssub.s32 256, 256
          %686 = vsyncadd %s676, %s685
          %s687 = smul.addr %s24, 4
          %s688 = sadd.s32 %s683, %s687
          %s689 = smul.addr %s23, 8
          %s690 = sadd.s32 %s688, %s689
          %s691 = smul.addr %s690, 64
          %s692 = scalar_lea.hbm %s4, %s691
          %s694 = sshll.u32 %s679, 4
          %s695 = int_to_ptr.vmem [resolvable:$true] %s694
          %697 = dma.vmem_to_hbm [thread:$0]  %s695, 256, %s692, %s676
        $region40: #{tpu_custom_call.1} parent=35 // pred_fallthru
          _
      $region36: #{tpu_custom_call.1} parent=5 // pred_fallthru
        _
      %p698 = scmp.le.s32.totalorder 2, %s13
      // Predicated region
      $region41: #{tpu_custom_call.1} parent=5 // pred_check
        %p699 = pneg %p698
      $region42: #{tpu_custom_call.1} parent=5 // pred_check_branch
        %701 = sbr.rel (%p699) target = $region44
      $region43: #{tpu_custom_call.1} parent=5 // pred_region
        %s702 = ssub.s32 %s13, 2
        // Predicated region
        $region45: #{tpu_custom_call.1} parent=43 // pred_check
          %p703 = pneg %p173
        $region46: #{tpu_custom_call.1} parent=43 // pred_check_branch
          %705 = sbr.rel (%p703) target = $region48
        $region47: #{tpu_custom_call.1} parent=43 // pred_region
          %s706 = sand.u32 %s158, 1
          %s707 = scalar_lea.sflag [#allocation3], %s706
          %s708 = sand.u32 %s158, 1
          %s709 = smul.addr %s708, 16
          %s710 = scalar_lea.vmem [#allocation2], %s709
          %711 = dma.done %s707, 256
        $region48: #{tpu_custom_call.1} parent=43 // pred_fallthru
          _
      $region44: #{tpu_custom_call.1} parent=5 // pred_fallthru
        _
    $region6: #{tpu_custom_call.1} parent=1 // loop_footer
      %s17 = sadd.s32 1, %s13
    $region7: #{tpu_custom_call.1} parent=1 // loop_footer_branch
      %12 = sbr.rel target = $region3
    $region8: #{tpu_custom_call.1} parent=1 // loop_exit
      _
    %712 = vsyncpa [#allocation3], 1
    %s713 = scalar_lea.sflag [#allocation3], 1
    %714 = vsyncpa %s713, 1

</llo_original>
